<compile_context>
chip_gen: v7x
topology: tpu7x:2x2x1
jax: 0.10.0
libtpu: 0.0.40
codegen_flags: <defaults>
</compile_context>

<pallas_src>
import jax
import jax.numpy as jnp
from jax.experimental import pallas as pl
from jax.experimental.pallas import tpu as pltpu

_LANE = 128
_SUBLANE = 8


def _round_up(x, m):
    return ((x + m - 1) // m) * m


def _pad_axis(arr, axis, target):
    pad = target - arr.shape[axis]
    if pad == 0:
        return arr
    widths = [(0, 0)] * arr.ndim
    widths[axis] = (0, pad)
    return jnp.pad(arr, widths)


def _tpu_info():
    try:
        return pltpu.get_tpu_info()
    except Exception:  # non-TPU backend or older jax: use safe defaults below
        return None


def _vmem_capacity_bytes(info):
    v = getattr(info, "vmem_capacity_bytes", None) if info is not None else None
    try:
        v = int(v)
    except (TypeError, ValueError):
        v = 0
    # Conservative default = v7x per-TC VMEM (64 MiB); v5e/v6e have 128 MiB.
    return v if v > 0 else 64 * 1024 * 1024


def _num_tensorcores(info):
    for name in ("num_cores", "tensorcore_count", "num_tensorcores",
                 "cores_per_chip"):
        v = getattr(info, name, None) if info is not None else None
        try:
            v = int(v)
        except (TypeError, ValueError):
            continue
        if v > 0:
            return v
    return 2  # assume multi-core so a TensorCore is never left idle


def _vmem_estimate_bytes(bm, in_dim, hidden_p, out_dim, weight_buffers,
                         itemsize=4):
    """Rough VMEM footprint: double-buffered activation tiles + weights
    (single- or double-buffered) + the two f32 hidden intermediates."""
    io = 2 * bm * (in_dim + out_dim) * itemsize
    w = weight_buffers * itemsize * (
        in_dim * hidden_p + hidden_p           # W1, b1
        + hidden_p * hidden_p + hidden_p       # W2, b2
        + hidden_p * out_dim + out_dim)        # W3, b3
    act = 2 * bm * hidden_p * itemsize         # h1, h2
    return io + w + act


def _select_bm(B, in_dim, hidden_p, out_dim, *, budget, min_grid_steps,
               weight_buffers):
    """Largest batch tile within the VMEM budget, with at least
    `min_grid_steps` grid steps (keeps every TensorCore busy while still
    amortizing the ~0.35us/step pipeline overhead)."""
    target = min(pl.cdiv(B, max(1, min_grid_steps)), 2048)
    bm = max(_SUBLANE, _round_up(target, _SUBLANE))
    bm = min(bm, _round_up(B, _SUBLANE))
    while bm > _SUBLANE and _vmem_estimate_bytes(
            bm, in_dim, hidden_p, out_dim, weight_buffers) > budget:
        bm = max(_SUBLANE, _round_up(bm // 2, _SUBLANE))
    return bm


def _mlp_kernel(x_ref, w1_ref, b1_ref, w2_ref, b2_ref, w3_ref, b3_ref, o_ref):
    """Linear -> ReLU -> Linear -> ReLU -> Linear for one batch tile."""

    def dot(lhs, w_ref):
        w = w_ref[...]
        if lhs.dtype != w.dtype:          # bf16 MXU operands when requested
            lhs = lhs.astype(w.dtype)
        return jnp.dot(lhs, w, preferred_element_type=jnp.float32)

    h1 = jnp.maximum(dot(x_ref[...], w1_ref) + b1_ref[...], 0.0)
    h2 = jnp.maximum(dot(h1, w2_ref) + b2_ref[...], 0.0)
    y = dot(h2, w3_ref) + b3_ref[...]
    o_ref[...] = y.astype(o_ref.dtype)    # natural-width store: (bm, out_dim)


def _pallas_forward(x, w1p, b1p, w2p, b2p, w3p, b3p, *, B, in_dim, hidden_p,
                    out_dim, bm, out_dtype, single_buffer_weights,
                    weight_buffers, vmem_clamp):
    grid = (pl.cdiv(B, bm),)

    est = _vmem_estimate_bytes(bm, in_dim, hidden_p, out_dim, weight_buffers)
    vmem_limit = int(min(max(2 * est, 16 * 1024 * 1024), vmem_clamp))

    spec_kwargs = {}
    if single_buffer_weights:
        # Constant index_map -> weights are fetched once; a second pipeline
        # buffer would be dead VMEM (only matters once hidden >= 1024, but it
        # is what lets large-hidden configs fit v7x's 64 MiB VMEM).
        spec_kwargs = dict(pipeline_mode=pl.Buffered(1))

    def full(arr):
        return pl.BlockSpec(arr.shape, lambda i: (0, 0), **spec_kwargs)

    return pl.pallas_call(
        _mlp_kernel,
        out_shape=jax.ShapeDtypeStruct((B, out_dim), out_dtype),
        grid_spec=pltpu.PrefetchScalarGridSpec(
            num_scalar_prefetch=0,
            grid=grid,
            in_specs=[
                pl.BlockSpec((bm, in_dim), lambda i: (i, 0)),  # x batch tile
                full(w1p), full(b1p),
                full(w2p), full(b2p),
                full(w3p), full(b3p),
            ],
            out_specs=pl.BlockSpec((bm, out_dim), lambda i: (i, 0)),
        ),
        compiler_params=pltpu.CompilerParams(
            dimension_semantics=("parallel",),
            vmem_limit_bytes=vmem_limit,
        ),
    )(x, w1p, b1p, w2p, b2p, w3p, b3p)


def conditional_vnet_forward(a_t, s, t, params, *, bm=None, matmul_dtype=None):
    """Pallas implementation of ConditionalVNet.forward.

    a_t: (B, a_dim), s: (B, s_dim), t: (B, 1)  -> returns (B, a_dim)
    """
    w1, b1, w2, b2, w3, b3 = params

    B, a_dim = a_t.shape
    s_dim = s.shape[1]
    in_dim = a_dim + s_dim + 1
    hidden = w1.shape[1]
    out_dim = w3.shape[1]

    # Fused layer-1 input: one (B, in_dim) operand -> single K=in_dim MXU dot.
    x = jnp.concatenate([a_t, s, t], axis=1)

    # Lane-dense hidden width (exact: padded hidden units stay 0 through
    # bias+ReLU and hit zero rows of W3).  The OUTPUT keeps its natural width
    # so the store is (B, out_dim), not a 128-wide padded slab.
    hidden_p = _round_up(hidden, _LANE)
    w1p = _pad_axis(w1, 1, hidden_p)                           # (in_dim, Hp)
    b1p = _pad_axis(b1.reshape(1, -1), 1, hidden_p)            # (1, Hp)
    w2p = _pad_axis(_pad_axis(w2, 0, hidden_p), 1, hidden_p)   # (Hp, Hp)
    b2p = _pad_axis(b2.reshape(1, -1), 1, hidden_p)            # (1, Hp)
    w3p = _pad_axis(w3, 0, hidden_p)                           # (Hp, out_dim)
    b3p = b3.reshape(1, -1)                                    # (1, out_dim)

    if matmul_dtype is not None:
        # Optional bf16 MXU operands (v6e/v7x are bf16-native).  Accumulation
        # and bias/ReLU stay f32; small numerics delta vs. the f32 reference.
        w1p, w2p, w3p = (w.astype(matmul_dtype) for w in (w1p, w2p, w3p))

    info = _tpu_info()
    vmem_cap = _vmem_capacity_bytes(info)
    budget = (vmem_cap * 3) // 8        # tile-selection budget (24 MiB on v7x)
    vmem_clamp = (vmem_cap * 3) // 4    # ~25% headroom for compiler scratch
    min_grid_steps = 2 if (B >= 16 and _num_tensorcores(info) >= 2) else 1

    last_err = None
    for single_buffer_weights in (True, False):
        weight_buffers = 1 if single_buffer_weights else 2
        bm_i = bm if bm is not None else _select_bm(
            B, in_dim, hidden_p, out_dim, budget=budget,
            min_grid_steps=min_grid_steps, weight_buffers=weight_buffers)
        bm_i = max(_SUBLANE,
                   _round_up(min(bm_i, _round_up(B, _SUBLANE)), _SUBLANE))
        try:
            return _pallas_forward(
                x, w1p, b1p, w2p, b2p, w3p, b3p,
                B=B, in_dim=in_dim, hidden_p=hidden_p, out_dim=out_dim,
                bm=bm_i, out_dtype=a_t.dtype,
                single_buffer_weights=single_buffer_weights,
                weight_buffers=weight_buffers, vmem_clamp=vmem_clamp)
        except Exception as e:
            # Fallback path: if pl.Buffered(1) is rejected by this jax build,
            # retry with default (double-buffered) weight specs.
            last_err = e
    raise last_err


def init_params(key, s_dim, a_dim, hidden):
    """Deterministic synthetic parameter init (matches the module's shapes)."""
    in_dim = a_dim + s_dim + 1
    k1, k2, k3 = jax.random.split(key, 3)

    def lin(k, fan_in, fan_out):
        bound = 1.0 / jnp.sqrt(fan_in)
        kw, kb = jax.random.split(k)
        w = jax.random.uniform(kw, (fan_in, fan_out), jnp.float32, -bound, bound)
        b = jax.random.uniform(kb, (1, fan_out), jnp.float32, -bound, bound)
        return w, b

    w1, b1 = lin(k1, in_dim, hidden)
    w2, b2 = lin(k2, hidden, hidden)
    w3, b3 = lin(k3, hidden, a_dim)
    return (w1, b1, w2, b2, w3, b3)


def _reference_forward(a_t, s, t, params):
    """Pure-JAX reference identical to the PyTorch forward."""
    w1, b1, w2, b2, w3, b3 = params
    x = jnp.concatenate([a_t, s, t], axis=1)
    h1 = jnp.maximum(x @ w1 + b1, 0.0)
    h2 = jnp.maximum(h1 @ w2 + b2, 0.0)
    return h2 @ w3 + b3


if __name__ == "__main__":
    # Small shapes consistent with the module (hidden=128 is the module
    # default and already lane-aligned).
    B, s_dim, a_dim, hidden = 8, 5, 2, 128

    key = jax.random.PRNGKey(0)
    kp, ka, ks, kt = jax.random.split(key, 4)

    params = init_params(kp, s_dim, a_dim, hidden)
    a_t = jax.random.normal(ka, (B, a_dim), jnp.float32)
    s = jax.random.normal(ks, (B, s_dim), jnp.float32)
    t = jax.random.uniform(kt, (B, 1), jnp.float32)

    out = conditional_vnet_forward(a_t, s, t, params)
    out = jax.block_until_ready(out)

    ref = _reference_forward(a_t, s, t, params)
    assert out.shape == (B, a_dim), out.shape
    assert jnp.allclose(out, ref, atol=1e-5, rtol=1e-5), "mismatch vs reference"

    print("KERNEL_OK")
</pallas_src>

<mosaic_0001>
module attributes {stable_mosaic.version = 11 : i64} {
  func.func @_mlp_kernel(%arg0: i32, %arg1: memref<8x8xf32, #tpu.memory_space<vmem>>, %arg2: memref<8x128xf32, #tpu.memory_space<vmem>>, %arg3: memref<1x128xf32, #tpu.memory_space<vmem>>, %arg4: memref<128x128xf32, #tpu.memory_space<vmem>>, %arg5: memref<1x128xf32, #tpu.memory_space<vmem>>, %arg6: memref<128x2xf32, #tpu.memory_space<vmem>>, %arg7: memref<1x2xf32, #tpu.memory_space<vmem>>, %arg8: memref<8x2xf32, #tpu.memory_space<vmem>>) attributes {dimension_semantics = [#tpu.dimension_semantics<parallel>], iteration_bounds = array<i64: 1>, scalar_prefetch = 0 : i64, scratch_operands = 0 : i64, tpu.core_type = #tpu.core_type<tc>, window_params = [{transform_indices = @transform_0, window_bounds = array<i64: 8, 8>}, {pipeline_mode = #tpu.pipeline_mode<synchronous>, transform_indices = @transform_1, window_bounds = array<i64: 8, 128>}, {pipeline_mode = #tpu.pipeline_mode<synchronous>, transform_indices = @transform_2, window_bounds = array<i64: 1, 128>}, {pipeline_mode = #tpu.pipeline_mode<synchronous>, transform_indices = @transform_3, window_bounds = array<i64: 128, 128>}, {pipeline_mode = #tpu.pipeline_mode<synchronous>, transform_indices = @transform_4, window_bounds = array<i64: 1, 128>}, {pipeline_mode = #tpu.pipeline_mode<synchronous>, transform_indices = @transform_5, window_bounds = array<i64: 128, 2>}, {pipeline_mode = #tpu.pipeline_mode<synchronous>, transform_indices = @transform_6, window_bounds = array<i64: 1, 2>}, {transform_indices = @transform_7, window_bounds = array<i64: 8, 2>}]} {
    %c0 = arith.constant 0 : index
    %c0_0 = arith.constant 0 : index
    %0 = vector.load %arg1[%c0, %c0_0] : memref<8x8xf32, #tpu.memory_space<vmem>>, vector<8x8xf32>
    %c0_1 = arith.constant 0 : index
    %c0_2 = arith.constant 0 : index
    %1 = vector.load %arg2[%c0_1, %c0_2] : memref<8x128xf32, #tpu.memory_space<vmem>>, vector<8x128xf32>
    %cst = arith.constant dense<0.000000e+00> : vector<8x128xf32>
    %2 = tpu.matmul %0, %1, %cst {dimension_numbers = #tpu.dot_dimension_numbers<[1], [0], [0], [1], [0, 0, 1, 1], [], []>} : vector<8x8xf32>, vector<8x128xf32>, vector<8x128xf32> -> vector<8x128xf32>
    %c0_3 = arith.constant 0 : index
    %c0_4 = arith.constant 0 : index
    %3 = vector.load %arg3[%c0_3, %c0_4] : memref<1x128xf32, #tpu.memory_space<vmem>>, vector<1x128xf32>
    %4 = vector.broadcast %3 : vector<1x128xf32> to vector<8x128xf32>
    %5 = arith.addf %2, %4 : vector<8x128xf32>
    %cst_5 = arith.constant 0.000000e+00 : f32
    %6 = vector.broadcast %cst_5 : f32 to vector<8x128xf32>
    %7 = arith.maximumf %5, %6 : vector<8x128xf32>
    %c0_6 = arith.constant 0 : index
    %c0_7 = arith.constant 0 : index
    %8 = vector.load %arg4[%c0_6, %c0_7] : memref<128x128xf32, #tpu.memory_space<vmem>>, vector<128x128xf32>
    %cst_8 = arith.constant dense<0.000000e+00> : vector<8x128xf32>
    %9 = tpu.matmul %7, %8, %cst_8 {dimension_numbers = #tpu.dot_dimension_numbers<[1], [0], [0], [1], [0, 0, 1, 1], [], []>} : vector<8x128xf32>, vector<128x128xf32>, vector<8x128xf32> -> vector<8x128xf32>
    %c0_9 = arith.constant 0 : index
    %c0_10 = arith.constant 0 : index
    %10 = vector.load %arg5[%c0_9, %c0_10] : memref<1x128xf32, #tpu.memory_space<vmem>>, vector<1x128xf32>
    %11 = vector.broadcast %10 : vector<1x128xf32> to vector<8x128xf32>
    %12 = arith.addf %9, %11 : vector<8x128xf32>
    %cst_11 = arith.constant 0.000000e+00 : f32
    %13 = vector.broadcast %cst_11 : f32 to vector<8x128xf32>
    %14 = arith.maximumf %12, %13 : vector<8x128xf32>
    %c0_12 = arith.constant 0 : index
    %c0_13 = arith.constant 0 : index
    %15 = vector.load %arg6[%c0_12, %c0_13] : memref<128x2xf32, #tpu.memory_space<vmem>>, vector<128x2xf32>
    %cst_14 = arith.constant dense<0.000000e+00> : vector<8x2xf32>
    %16 = tpu.matmul %14, %15, %cst_14 {dimension_numbers = #tpu.dot_dimension_numbers<[1], [0], [0], [1], [0, 0, 1, 1], [], []>} : vector<8x128xf32>, vector<128x2xf32>, vector<8x2xf32> -> vector<8x2xf32>
    %c0_15 = arith.constant 0 : index
    %c0_16 = arith.constant 0 : index
    %17 = vector.load %arg7[%c0_15, %c0_16] : memref<1x2xf32, #tpu.memory_space<vmem>>, vector<1x2xf32>
    %18 = vector.broadcast %17 : vector<1x2xf32> to vector<8x2xf32>
    %19 = arith.addf %16, %18 : vector<8x2xf32>
    %c0_17 = arith.constant 0 : index
    %c0_18 = arith.constant 0 : index
    %20 = vector.load %arg8[%c0_17, %c0_18] : memref<8x2xf32, #tpu.memory_space<vmem>>, vector<8x2xf32>
    tpu.vector_store %arg8[%c0_17, %c0_18], %19 {strides = array<i32>} : memref<8x2xf32, #tpu.memory_space<vmem>>, vector<8x2xf32>,
    return
  }
  func.func @transform_0(%arg0: i32) -> (i32, i32) {
    %c0_i32 = arith.constant 0 : i32
    %c0_i32_0 = arith.constant 0 : i32
    return %arg0, %c0_i32 : i32, i32
  }
  func.func @transform_1(%arg0: i32) -> (i32, i32) {
    %c0_i32 = arith.constant 0 : i32
    %c0_i32_0 = arith.constant 0 : i32
    %c0_i32_1 = arith.constant 0 : i32
    return %c0_i32, %c0_i32_0 : i32, i32
  }
  func.func @transform_2(%arg0: i32) -> (i32, i32) {
    %c0_i32 = arith.constant 0 : i32
    %c0_i32_0 = arith.constant 0 : i32
    %c0_i32_1 = arith.constant 0 : i32
    return %c0_i32, %c0_i32_0 : i32, i32
  }
  func.func @transform_3(%arg0: i32) -> (i32, i32) {
    %c0_i32 = arith.constant 0 : i32
    %c0_i32_0 = arith.constant 0 : i32
    %c0_i32_1 = arith.constant 0 : i32
    return %c0_i32, %c0_i32_0 : i32, i32
  }
  func.func @transform_4(%arg0: i32) -> (i32, i32) {
    %c0_i32 = arith.constant 0 : i32
    %c0_i32_0 = arith.constant 0 : i32
    %c0_i32_1 = arith.constant 0 : i32
    return %c0_i32, %c0_i32_0 : i32, i32
  }
  func.func @transform_5(%arg0: i32) -> (i32, i32) {
    %c0_i32 = arith.constant 0 : i32
    %c0_i32_0 = arith.constant 0 : i32
    %c0_i32_1 = arith.constant 0 : i32
    return %c0_i32, %c0_i32_0 : i32, i32
  }
  func.func @transform_6(%arg0: i32) -> (i32, i32) {
    %c0_i32 = arith.constant 0 : i32
    %c0_i32_0 = arith.constant 0 : i32
    %c0_i32_1 = arith.constant 0 : i32
    return %c0_i32, %c0_i32_0 : i32, i32
  }
  func.func @transform_7(%arg0: i32) -> (i32, i32) {
    %c0_i32 = arith.constant 0 : i32
    %c0_i32_0 = arith.constant 0 : i32
    return %arg0, %c0_i32 : i32, i32
  }
}

module attributes {stable_mosaic.version = 11 : i64} {
  func.func @_mlp_kernel(%arg0: i32, %arg1: memref<8x8xf32, #tpu.memory_space<vmem>>, %arg2: memref<8x128xf32, #tpu.memory_space<vmem>>, %arg3: memref<1x128xf32, #tpu.memory_space<vmem>>, %arg4: memref<128x128xf32, #tpu.memory_space<vmem>>, %arg5: memref<1x128xf32, #tpu.memory_space<vmem>>, %arg6: memref<128x2xf32, #tpu.memory_space<vmem>>, %arg7: memref<1x2xf32, #tpu.memory_space<vmem>>, %arg8: memref<8x2xf32, #tpu.memory_space<vmem>>) attributes {dimension_semantics = [#tpu.dimension_semantics<parallel>], iteration_bounds = array<i64: 1>, scalar_prefetch = 0 : i64, scratch_operands = 0 : i64, tpu.core_type = #tpu.core_type<tc>, window_params = [{transform_indices = @transform_0, window_bounds = array<i64: 8, 8>}, {pipeline_mode = #tpu.pipeline_mode<synchronous>, transform_indices = @transform_1, window_bounds = array<i64: 8, 128>}, {pipeline_mode = #tpu.pipeline_mode<synchronous>, transform_indices = @transform_2, window_bounds = array<i64: 1, 128>}, {pipeline_mode = #tpu.pipeline_mode<synchronous>, transform_indices = @transform_3, window_bounds = array<i64: 128, 128>}, {pipeline_mode = #tpu.pipeline_mode<synchronous>, transform_indices = @transform_4, window_bounds = array<i64: 1, 128>}, {pipeline_mode = #tpu.pipeline_mode<synchronous>, transform_indices = @transform_5, window_bounds = array<i64: 128, 2>}, {pipeline_mode = #tpu.pipeline_mode<synchronous>, transform_indices = @transform_6, window_bounds = array<i64: 1, 2>}, {transform_indices = @transform_7, window_bounds = array<i64: 8, 2>}]} {
    %c0 = arith.constant 0 : index
    %c0_0 = arith.constant 0 : index
    %0 = vector.load %arg1[%c0, %c0_0] : memref<8x8xf32, #tpu.memory_space<vmem>>, vector<8x8xf32>
    %c0_1 = arith.constant 0 : index
    %c0_2 = arith.constant 0 : index
    %1 = vector.load %arg2[%c0_1, %c0_2] : memref<8x128xf32, #tpu.memory_space<vmem>>, vector<8x128xf32>
    %cst = arith.constant dense<0.000000e+00> : vector<8x128xf32>
    %2 = tpu.matmul %0, %1, %cst {dimension_numbers = #tpu.dot_dimension_numbers<[1], [0], [0], [1], [0, 0, 1, 1], [], []>} : vector<8x8xf32>, vector<8x128xf32>, vector<8x128xf32> -> vector<8x128xf32>
    %c0_3 = arith.constant 0 : index
    %c0_4 = arith.constant 0 : index
    %3 = vector.load %arg3[%c0_3, %c0_4] : memref<1x128xf32, #tpu.memory_space<vmem>>, vector<1x128xf32>
    %4 = vector.broadcast %3 : vector<1x128xf32> to vector<8x128xf32>
    %5 = arith.addf %2, %4 : vector<8x128xf32>
    %cst_5 = arith.constant 0.000000e+00 : f32
    %6 = vector.broadcast %cst_5 : f32 to vector<8x128xf32>
    %7 = arith.maximumf %5, %6 : vector<8x128xf32>
    %c0_6 = arith.constant 0 : index
    %c0_7 = arith.constant 0 : index
    %8 = vector.load %arg4[%c0_6, %c0_7] : memref<128x128xf32, #tpu.memory_space<vmem>>, vector<128x128xf32>
    %cst_8 = arith.constant dense<0.000000e+00> : vector<8x128xf32>
    %9 = tpu.matmul %7, %8, %cst_8 {dimension_numbers = #tpu.dot_dimension_numbers<[1], [0], [0], [1], [0, 0, 1, 1], [], []>} : vector<8x128xf32>, vector<128x128xf32>, vector<8x128xf32> -> vector<8x128xf32>
    %c0_9 = arith.constant 0 : index
    %c0_10 = arith.constant 0 : index
    %10 = vector.load %arg5[%c0_9, %c0_10] : memref<1x128xf32, #tpu.memory_space<vmem>>, vector<1x128xf32>
    %11 = vector.broadcast %10 : vector<1x128xf32> to vector<8x128xf32>
    %12 = arith.addf %9, %11 : vector<8x128xf32>
    %cst_11 = arith.constant 0.000000e+00 : f32
    %13 = vector.broadcast %cst_11 : f32 to vector<8x128xf32>
    %14 = arith.maximumf %12, %13 : vector<8x128xf32>
    %c0_12 = arith.constant 0 : index
    %c0_13 = arith.constant 0 : index
    %15 = vector.load %arg6[%c0_12, %c0_13] : memref<128x2xf32, #tpu.memory_space<vmem>>, vector<128x2xf32>
    %cst_14 = arith.constant dense<0.000000e+00> : vector<8x2xf32>
    %16 = tpu.matmul %14, %15, %cst_14 {dimension_numbers = #tpu.dot_dimension_numbers<[1], [0], [0], [1], [0, 0, 1, 1], [], []>} : vector<8x128xf32>, vector<128x2xf32>, vector<8x2xf32> -> vector<8x2xf32>
    %c0_15 = arith.constant 0 : index
    %c0_16 = arith.constant 0 : index
    %17 = vector.load %arg7[%c0_15, %c0_16] : memref<1x2xf32, #tpu.memory_space<vmem>>, vector<1x2xf32>
    %18 = vector.broadcast %17 : vector<1x2xf32> to vector<8x2xf32>
    %19 = arith.addf %16, %18 : vector<8x2xf32>
    %c0_17 = arith.constant 0 : index
    %c0_18 = arith.constant 0 : index
    %20 = vector.load %arg8[%c0_17, %c0_18] : memref<8x2xf32, #tpu.memory_space<vmem>>, vector<8x2xf32>
    tpu.vector_store %arg8[%c0_17, %c0_18], %19 {strides = array<i32>} : memref<8x2xf32, #tpu.memory_space<vmem>>, vector<8x2xf32>,
    return
  }
  func.func @transform_0(%arg0: i32) -> (i32, i32) {
    %c0_i32 = arith.constant 0 : i32
    %c0_i32_0 = arith.constant 0 : i32
    return %arg0, %c0_i32 : i32, i32
  }
  func.func @transform_1(%arg0: i32) -> (i32, i32) {
    %c0_i32 = arith.constant 0 : i32
    %c0_i32_0 = arith.constant 0 : i32
    %c0_i32_1 = arith.constant 0 : i32
    return %c0_i32, %c0_i32_0 : i32, i32
  }
  func.func @transform_2(%arg0: i32) -> (i32, i32) {
    %c0_i32 = arith.constant 0 : i32
    %c0_i32_0 = arith.constant 0 : i32
    %c0_i32_1 = arith.constant 0 : i32
    return %c0_i32, %c0_i32_0 : i32, i32
  }
  func.func @transform_3(%arg0: i32) -> (i32, i32) {
    %c0_i32 = arith.constant 0 : i32
    %c0_i32_0 = arith.constant 0 : i32
    %c0_i32_1 = arith.constant 0 : i32
    return %c0_i32, %c0_i32_0 : i32, i32
  }
  func.func @transform_4(%arg0: i32) -> (i32, i32) {
    %c0_i32 = arith.constant 0 : i32
    %c0_i32_0 = arith.constant 0 : i32
    %c0_i32_1 = arith.constant 0 : i32
    return %c0_i32, %c0_i32_0 : i32, i32
  }
  func.func @transform_5(%arg0: i32) -> (i32, i32) {
    %c0_i32 = arith.constant 0 : i32
    %c0_i32_0 = arith.constant 0 : i32
    %c0_i32_1 = arith.constant 0 : i32
    return %c0_i32, %c0_i32_0 : i32, i32
  }
  func.func @transform_6(%arg0: i32) -> (i32, i32) {
    %c0_i32 = arith.constant 0 : i32
    %c0_i32_0 = arith.constant 0 : i32
    %c0_i32_1 = arith.constant 0 : i32
    return %c0_i32, %c0_i32_0 : i32, i32
  }
  func.func @transform_7(%arg0: i32) -> (i32, i32) {
    %c0_i32 = arith.constant 0 : i32
    %c0_i32_0 = arith.constant 0 : i32
    return %arg0, %c0_i32 : i32, i32
  }
}

</mosaic_0001>

<llo_original>
// kernel: tpu_custom_call.1
$region0: #{tpu_custom_call.1}
  #allocation0 [shape = 'u32[]', space=smem, size = 0x4, offset = 0x4, fixed_abs, tag = 'smem constant byte address 0x4 - core index']
  #allocation1 [shape = 'u32[144,128]{1,0:T(1,128)}', space=vmem, size = 0x12000, scoped, tag = 'internal scratch']
  %s0 = inlined_call_operand.vmem [shape: f32[8,8], index: 0, kind: input, shape index: {}]
  %s1 = inlined_call_operand.hbm [shape: f32[8,128], index: 1, kind: input, shape index: {}]
  %s2 = inlined_call_operand.vmem [shape: f32[1,128], index: 2, kind: input, shape index: {}]
  %s3 = inlined_call_operand.vmem [shape: f32[128,128], index: 3, kind: input, shape index: {}]
  %s4 = inlined_call_operand.vmem [shape: f32[1,128], index: 4, kind: input, shape index: {}]
  %s5 = inlined_call_operand.vmem [shape: f32[128,2], index: 5, kind: input, shape index: {}]
  %s6 = inlined_call_operand.vmem [shape: f32[1,2], index: 6, kind: input, shape index: {}]
  %s7 = inlined_call_operand.vmem [shape: f32[8,2], index: 7, kind: output, shape index: {}]
  %s8 = sld [smem:[#allocation0]]
  $region42: #{tpu_custom_call.1} parent=0
    _
  %s10 = ssub.s32 1, %s8
  %s11 = scalar_select 0, %s10, %s8
  $region1: #{tpu_custom_call.1} parent=0
    #allocation2 [shape = 'u8[4096]{0}', space=vmem, size = 0x1000, scoped, tag = 'input window, operand 1, single buffered']
    #allocation3 [shape = 's32[1]{0}', space=sflag, size = 0x4, scoped, tag = 'scoped memory for tpu_custom_call.1']
    %12 = vsyncpa [#allocation3], 0
    // Predicated region
    $region2: #{tpu_custom_call.1} parent=1 // pred_check
      _
    $region3: #{tpu_custom_call.1} parent=1 // pred_check_branch
      %14 = sbr.rel (0) target = $region5
    $region4: #{tpu_custom_call.1} parent=1 // pred_region
      _
    $region5: #{tpu_custom_call.1} parent=1 // pred_fallthru
      _
    // Predicated region
    $region6: #{tpu_custom_call.1} parent=1 // pred_check
      _
    $region7: #{tpu_custom_call.1} parent=1 // pred_check_branch
      %16 = sbr.rel (0) target = $region9
    $region8: #{tpu_custom_call.1} parent=1 // pred_region
      %s18 = ssub.s32 128, 128
      %19 = vsyncadd [#allocation3], %s18
      %s21 = sshll.u32 [#allocation2], 4
      %s22 = int_to_ptr.vmem [resolvable:$true] %s21
      %24 = dma.hbm_to_vmem [thread:$0]  %s1, 128, %s22, [#allocation3]
    $region9: #{tpu_custom_call.1} parent=1 // pred_fallthru
      _
    // Predicated region
    $region10: #{tpu_custom_call.1} parent=1 // pred_check
      _
    $region11: #{tpu_custom_call.1} parent=1 // pred_check_branch
      %26 = sbr.rel (0) target = $region13
    $region12: #{tpu_custom_call.1} parent=1 // pred_region
      _
    $region13: #{tpu_custom_call.1} parent=1 // pred_fallthru
      _
    // Predicated region
    $region14: #{tpu_custom_call.1} parent=1 // pred_check
      _
    $region15: #{tpu_custom_call.1} parent=1 // pred_check_branch
      %28 = sbr.rel (0) target = $region17
    $region16: #{tpu_custom_call.1} parent=1 // pred_region
      _
    $region17: #{tpu_custom_call.1} parent=1 // pred_fallthru
      _
    // Predicated region
    $region18: #{tpu_custom_call.1} parent=1 // pred_check
      _
    $region19: #{tpu_custom_call.1} parent=1 // pred_check_branch
      %30 = sbr.rel (0) target = $region21
    $region20: #{tpu_custom_call.1} parent=1 // pred_region
      _
    $region21: #{tpu_custom_call.1} parent=1 // pred_fallthru
      _
    // Predicated region
    $region22: #{tpu_custom_call.1} parent=1 // pred_check
      _
    $region23: #{tpu_custom_call.1} parent=1 // pred_check_branch
      %32 = sbr.rel (0) target = $region25
    $region24: #{tpu_custom_call.1} parent=1 // pred_region
      _
    $region25: #{tpu_custom_call.1} parent=1 // pred_fallthru
      _
    // Predicated region
    $region26: #{tpu_custom_call.1} parent=1 // pred_check
      _
    $region27: #{tpu_custom_call.1} parent=1 // pred_check_branch
      %34 = sbr.rel (0) target = $region29
    $region28: #{tpu_custom_call.1} parent=1 // pred_region
      _
    $region29: #{tpu_custom_call.1} parent=1 // pred_fallthru
      _
    // Predicated region
    $region30: #{tpu_custom_call.1} parent=1 // pred_check
      _
    $region31: #{tpu_custom_call.1} parent=1 // pred_check_branch
      %36 = sbr.rel (0) target = $region33
    $region32: #{tpu_custom_call.1} parent=1 // pred_region
      %37 = dma.done [#allocation3], 128
    $region33: #{tpu_custom_call.1} parent=1 // pred_fallthru
      _
    %v38 = vld [vmem:[%s0] sm:$0xff]
    %v39 = vld [vmem:[#allocation2] sm:$0xff]
    %v40 = vld [vmem:[%s2] sm:$0x1]
    %v42 = vlaneseq
    %v43 = vshrl.u32 %v42, 7
    %v44 = vsub.s32 0, %v43
    %v45 = vrot.slane %v40, %v44
    %vm47 = vcmask 64512
    %v49 = vsel %vm47, %v38, 0
    %51 = vmatprep.subr.mxu0 0.0
    %52 = vmatpush1.msra.mxu0 %v39
    %53 = vmatprep.subr.mxu0 0.0
    %54 = vmatpush1.msra.mxu0 0.0
    %55 = vmatprep.subr.mxu0 0.0
    %56 = vmatpush1.msra.mxu0 0.0
    %57 = vmatprep.subr.mxu0 0.0
    %58 = vmatpush1.msra.mxu0 0.0
    %59 = vmatprep.subr.mxu0 0.0
    %60 = vmatpush1.msra.mxu0 0.0
    %61 = vmatprep.subr.mxu0 0.0
    %62 = vmatpush1.msra.mxu0 0.0
    %63 = vmatprep.subr.mxu0 0.0
    %64 = vmatpush1.msra.mxu0 0.0
    %65 = vmatprep.subr.mxu0 0.0
    %66 = vmatpush1.msra.mxu0 0.0
    %67 = vmatprep.subr.mxu0 0.0
    %68 = vmatpush1.msra.mxu0 0.0
    %69 = vmatprep.subr.mxu0 0.0
    %70 = vmatpush1.msra.mxu0 0.0
    %71 = vmatprep.subr.mxu0 0.0
    %72 = vmatpush1.msra.mxu0 0.0
    %73 = vmatprep.subr.mxu0 0.0
    %74 = vmatpush1.msra.mxu0 0.0
    %75 = vmatprep.subr.mxu0 0.0
    %76 = vmatpush1.msra.mxu0 0.0
    %77 = vmatprep.subr.mxu0 0.0
    %78 = vmatpush1.msra.mxu0 0.0
    %79 = vmatprep.subr.mxu0 0.0
    %80 = vmatpush1.msra.mxu0 0.0
    %81 = vmatprep.subr.mxu0 0.0
    %82 = vmatpush1.msra.mxu0 0.0
    %83 = vmatprep.subr.mxu0 0.0
    %84 = vmatpush1.msra.mxu0 0.0
    %85 = vmatprep.subr.mxu0 0.0
    %86 = vmatpush1.msra.mxu0 0.0
    %87 = vmatprep.subr.mxu0 0.0
    %88 = vmatpush1.msra.mxu0 0.0
    %89 = vmatprep.subr.mxu0 0.0
    %90 = vmatpush1.msra.mxu0 0.0
    %91 = vmatprep.subr.mxu0 0.0
    %92 = vmatpush1.msra.mxu0 0.0
    %93 = vmatprep.subr.mxu0 0.0
    %94 = vmatpush1.msra.mxu0 0.0
    %95 = vmatprep.subr.mxu0 0.0
    %96 = vmatpush1.msra.mxu0 0.0
    %97 = vmatprep.subr.mxu0 0.0
    %98 = vmatpush1.msra.mxu0 0.0
    %99 = vmatprep.subr.mxu0 0.0
    %100 = vmatpush1.msra.mxu0 0.0
    %101 = vmatprep.subr.mxu0 0.0
    %102 = vmatpush1.msra.mxu0 0.0
    %103 = vmatprep.subr.mxu0 0.0
    %104 = vmatpush1.msra.mxu0 0.0
    %105 = vmatprep.subr.mxu0 0.0
    %106 = vmatpush1.msra.mxu0 0.0
    %107 = vmatprep.subr.mxu0 0.0
    %108 = vmatpush1.msra.mxu0 0.0
    %109 = vmatprep.subr.mxu0 0.0
    %110 = vmatpush1.msra.mxu0 0.0
    %111 = vmatprep.subr.mxu0 0.0
    %112 = vmatpush1.msra.mxu0 0.0
    %113 = vmatprep.subr.mxu0 0.0
    %114 = vmatpush1.msra.mxu0 0.0
    %115 = vmatprep.mubr.f32.mxu0 0.0
    %116 = vmatmul.mubr.f32.gmra.mrb[0].mxu0 %v49
    %v117 = vpop.f32.mrb[0].mxu0
    %v118 = vadd.f32 %v45, %v117
    %v119 = vpop.f32.mrb[0].mxu0
    %120 = vdwg.mxu0
    %v121 = vmax.f32 %v118, 0.0
    %v122 = vld [vmem:[%s3] sm:$0xff]
    %v123 = vld [vmem:[%s3 + $0x8] sm:$0xff]
    %v124 = vld [vmem:[%s3 + $0x10] sm:$0xff]
    %v125 = vld [vmem:[%s3 + $0x18] sm:$0xff]
    %v126 = vld [vmem:[%s3 + $0x20] sm:$0xff]
    %v127 = vld [vmem:[%s3 + $0x28] sm:$0xff]
    %v128 = vld [vmem:[%s3 + $0x30] sm:$0xff]
    %v129 = vld [vmem:[%s3 + $0x38] sm:$0xff]
    %v130 = vld [vmem:[%s3 + $0x40] sm:$0xff]
    %v131 = vld [vmem:[%s3 + $0x48] sm:$0xff]
    %v132 = vld [vmem:[%s3 + $0x50] sm:$0xff]
    %v133 = vld [vmem:[%s3 + $0x58] sm:$0xff]
    %v134 = vld [vmem:[%s3 + $0x60] sm:$0xff]
    %v135 = vld [vmem:[%s3 + $0x68] sm:$0xff]
    %v136 = vld [vmem:[%s3 + $0x70] sm:$0xff]
    %v137 = vld [vmem:[%s3 + $0x78] sm:$0xff]
    %v138 = vld [vmem:[%s4] sm:$0x1]
    %v140 = vlaneseq
    %v141 = vshrl.u32 %v140, 7
    %v142 = vsub.s32 0, %v141
    %v143 = vrot.slane %v138, %v142
    %145 = vmatprep.subr.mxu0 0.0
    %146 = vmatpush1.msra.mxu0 %v122
    %147 = vmatprep.subr.mxu0 0.0
    %148 = vmatpush1.msra.mxu0 %v123
    %149 = vmatprep.subr.mxu0 0.0
    %150 = vmatpush1.msra.mxu0 %v124
    %151 = vmatprep.subr.mxu0 0.0
    %152 = vmatpush1.msra.mxu0 %v125
    %153 = vmatprep.subr.mxu0 0.0
    %154 = vmatpush1.msra.mxu0 %v126
    %155 = vmatprep.subr.mxu0 0.0
    %156 = vmatpush1.msra.mxu0 %v127
    %157 = vmatprep.subr.mxu0 0.0
    %158 = vmatpush1.msra.mxu0 %v128
    %159 = vmatprep.subr.mxu0 0.0
    %160 = vmatpush1.msra.mxu0 %v129
    %161 = vmatprep.subr.mxu0 0.0
    %162 = vmatpush1.msra.mxu0 %v130
    %163 = vmatprep.subr.mxu0 0.0
    %164 = vmatpush1.msra.mxu0 %v131
    %165 = vmatprep.subr.mxu0 0.0
    %166 = vmatpush1.msra.mxu0 %v132
    %167 = vmatprep.subr.mxu0 0.0
    %168 = vmatpush1.msra.mxu0 %v133
    %169 = vmatprep.subr.mxu0 0.0
    %170 = vmatpush1.msra.mxu0 %v134
    %171 = vmatprep.subr.mxu0 0.0
    %172 = vmatpush1.msra.mxu0 %v135
    %173 = vmatprep.subr.mxu0 0.0
    %174 = vmatpush1.msra.mxu0 %v136
    %175 = vmatprep.subr.mxu0 0.0
    %176 = vmatpush1.msra.mxu0 %v137
    %177 = vmatprep.subr.mxu0 0.0
    %178 = vmatpush1.msra.mxu0 0.0
    %179 = vmatprep.subr.mxu0 0.0
    %180 = vmatpush1.msra.mxu0 0.0
    %181 = vmatprep.subr.mxu0 0.0
    %182 = vmatpush1.msra.mxu0 0.0
    %183 = vmatprep.subr.mxu0 0.0
    %184 = vmatpush1.msra.mxu0 0.0
    %185 = vmatprep.subr.mxu0 0.0
    %186 = vmatpush1.msra.mxu0 0.0
    %187 = vmatprep.subr.mxu0 0.0
    %188 = vmatpush1.msra.mxu0 0.0
    %189 = vmatprep.subr.mxu0 0.0
    %190 = vmatpush1.msra.mxu0 0.0
    %191 = vmatprep.subr.mxu0 0.0
    %192 = vmatpush1.msra.mxu0 0.0
    %193 = vmatprep.subr.mxu0 0.0
    %194 = vmatpush1.msra.mxu0 0.0
    %195 = vmatprep.subr.mxu0 0.0
    %196 = vmatpush1.msra.mxu0 0.0
    %197 = vmatprep.subr.mxu0 0.0
    %198 = vmatpush1.msra.mxu0 0.0
    %199 = vmatprep.subr.mxu0 0.0
    %200 = vmatpush1.msra.mxu0 0.0
    %201 = vmatprep.subr.mxu0 0.0
    %202 = vmatpush1.msra.mxu0 0.0
    %203 = vmatprep.subr.mxu0 0.0
    %204 = vmatpush1.msra.mxu0 0.0
    %205 = vmatprep.subr.mxu0 0.0
    %206 = vmatpush1.msra.mxu0 0.0
    %207 = vmatprep.subr.mxu0 0.0
    %208 = vmatpush1.msra.mxu0 0.0
    %209 = vmatprep.mubr.f32.mxu0 0.0
    %210 = vmatmul.mubr.f32.gmra.mrb[0].mxu0 %v121
    %v211 = vpop.f32.mrb[0].mxu0
    %v212 = vadd.f32 %v143, %v211
    %v213 = vpop.f32.mrb[0].mxu0
    %214 = vdwg.mxu0
    %v215 = vmax.f32 %v212, 0.0
    %v216 = vld [vmem:[%s5] sm:$0xff]
    %v217 = vld [vmem:[%s5 + $0x8] sm:$0xff]
    %v218 = vld [vmem:[%s5 + $0x10] sm:$0xff]
    %v219 = vld [vmem:[%s5 + $0x18] sm:$0xff]
    %v220 = vld [vmem:[%s5 + $0x20] sm:$0xff]
    %v221 = vld [vmem:[%s5 + $0x28] sm:$0xff]
    %v222 = vld [vmem:[%s5 + $0x30] sm:$0xff]
    %v223 = vld [vmem:[%s5 + $0x38] sm:$0xff]
    %v224 = vld [vmem:[%s5 + $0x40] sm:$0xff]
    %v225 = vld [vmem:[%s5 + $0x48] sm:$0xff]
    %v226 = vld [vmem:[%s5 + $0x50] sm:$0xff]
    %v227 = vld [vmem:[%s5 + $0x58] sm:$0xff]
    %v228 = vld [vmem:[%s5 + $0x60] sm:$0xff]
    %v229 = vld [vmem:[%s5 + $0x68] sm:$0xff]
    %v230 = vld [vmem:[%s5 + $0x70] sm:$0xff]
    %v231 = vld [vmem:[%s5 + $0x78] sm:$0xff]
    %v232 = vld [vmem:[%s6] sm:$0x1]
    %v234 = vlaneseq
    %v235 = vshrl.u32 %v234, 7
    %v236 = vsub.s32 0, %v235
    %v237 = vrot.slane %v232, %v236
    %239 = vmatprep.subr.mxu0 0.0
    %240 = vmatpush1.msra.mxu0 %v216
    %241 = vmatprep.subr.mxu0 0.0
    %242 = vmatpush1.msra.mxu0 %v217
    %243 = vmatprep.subr.mxu0 0.0
    %244 = vmatpush1.msra.mxu0 %v218
    %245 = vmatprep.subr.mxu0 0.0
    %246 = vmatpush1.msra.mxu0 %v219
    %247 = vmatprep.subr.mxu0 0.0
    %248 = vmatpush1.msra.mxu0 %v220
    %249 = vmatprep.subr.mxu0 0.0
    %250 = vmatpush1.msra.mxu0 %v221
    %251 = vmatprep.subr.mxu0 0.0
    %252 = vmatpush1.msra.mxu0 %v222
    %253 = vmatprep.subr.mxu0 0.0
    %254 = vmatpush1.msra.mxu0 %v223
    %255 = vmatprep.subr.mxu0 0.0
    %256 = vmatpush1.msra.mxu0 %v224
    %257 = vmatprep.subr.mxu0 0.0
    %258 = vmatpush1.msra.mxu0 %v225
    %259 = vmatprep.subr.mxu0 0.0
    %260 = vmatpush1.msra.mxu0 %v226
    %261 = vmatprep.subr.mxu0 0.0
    %262 = vmatpush1.msra.mxu0 %v227
    %263 = vmatprep.subr.mxu0 0.0
    %264 = vmatpush1.msra.mxu0 %v228
    %265 = vmatprep.subr.mxu0 0.0
    %266 = vmatpush1.msra.mxu0 %v229
    %267 = vmatprep.subr.mxu0 0.0
    %268 = vmatpush1.msra.mxu0 %v230
    %269 = vmatprep.subr.mxu0 0.0
    %270 = vmatpush1.msra.mxu0 %v231
    %271 = vmatprep.subr.mxu0 0.0
    %272 = vmatpush1.msra.mxu0 0.0
    %273 = vmatprep.subr.mxu0 0.0
    %274 = vmatpush1.msra.mxu0 0.0
    %275 = vmatprep.subr.mxu0 0.0
    %276 = vmatpush1.msra.mxu0 0.0
    %277 = vmatprep.subr.mxu0 0.0
    %278 = vmatpush1.msra.mxu0 0.0
    %279 = vmatprep.subr.mxu0 0.0
    %280 = vmatpush1.msra.mxu0 0.0
    %281 = vmatprep.subr.mxu0 0.0
    %282 = vmatpush1.msra.mxu0 0.0
    %283 = vmatprep.subr.mxu0 0.0
    %284 = vmatpush1.msra.mxu0 0.0
    %285 = vmatprep.subr.mxu0 0.0
    %286 = vmatpush1.msra.mxu0 0.0
    %287 = vmatprep.subr.mxu0 0.0
    %288 = vmatpush1.msra.mxu0 0.0
    %289 = vmatprep.subr.mxu0 0.0
    %290 = vmatpush1.msra.mxu0 0.0
    %291 = vmatprep.subr.mxu0 0.0
    %292 = vmatpush1.msra.mxu0 0.0
    %293 = vmatprep.subr.mxu0 0.0
    %294 = vmatpush1.msra.mxu0 0.0
    %295 = vmatprep.subr.mxu0 0.0
    %296 = vmatpush1.msra.mxu0 0.0
    %297 = vmatprep.subr.mxu0 0.0
    %298 = vmatpush1.msra.mxu0 0.0
    %299 = vmatprep.subr.mxu0 0.0
    %300 = vmatpush1.msra.mxu0 0.0
    %301 = vmatprep.subr.mxu0 0.0
    %302 = vmatpush1.msra.mxu0 0.0
    %303 = vmatprep.mubr.f32.mxu0 0.0
    %304 = vmatmul.mubr.f32.gmra.mrb[0].mxu0 %v215
    %v305 = vpop.f32.mrb[0].mxu0
    %v306 = vadd.f32 %v237, %v305
    %v307 = vpop.f32.mrb[0].mxu0
    %308 = vdwg.mxu0
    %vm309 = vcmask 15360
    %310 = vst.msk [vmem:[%s7] sm:$0xff] %vm309, %v306
    // Predicated region
    $region34: #{tpu_custom_call.1} parent=1 // pred_check
      _
    $region35: #{tpu_custom_call.1} parent=1 // pred_check_branch
      %312 = sbr.rel (0) target = $region37
    $region36: #{tpu_custom_call.1} parent=1 // pred_region
      _
    $region37: #{tpu_custom_call.1} parent=1 // pred_fallthru
      _
    // Predicated region
    $region38: #{tpu_custom_call.1} parent=1 // pred_check
      _
    $region39: #{tpu_custom_call.1} parent=1 // pred_check_branch
      %314 = sbr.rel (0) target = $region41
    $region40: #{tpu_custom_call.1} parent=1 // pred_region
      _
    $region41: #{tpu_custom_call.1} parent=1 // pred_fallthru
      _
    %315 = vsyncpa [#allocation3], 1

// kernel: tpu_custom_call.1
$region0: #{tpu_custom_call.1}
  #allocation0 [shape = 'u32[]', space=smem, size = 0x4, offset = 0x4, fixed_abs, tag = 'smem constant byte address 0x4 - core index']
  #allocation1 [shape = 'u32[144,128]{1,0:T(1,128)}', space=vmem, size = 0x12000, scoped, tag = 'internal scratch']
  %s0 = inlined_call_operand.vmem [shape: f32[8,8], index: 0, kind: input, shape index: {}]
  %s1 = inlined_call_operand.hbm [shape: f32[8,128], index: 1, kind: input, shape index: {}]
  %s2 = inlined_call_operand.vmem [shape: f32[1,128], index: 2, kind: input, shape index: {}]
  %s3 = inlined_call_operand.vmem [shape: f32[128,128], index: 3, kind: input, shape index: {}]
  %s4 = inlined_call_operand.vmem [shape: f32[1,128], index: 4, kind: input, shape index: {}]
  %s5 = inlined_call_operand.vmem [shape: f32[128,2], index: 5, kind: input, shape index: {}]
  %s6 = inlined_call_operand.vmem [shape: f32[1,2], index: 6, kind: input, shape index: {}]
  %s7 = inlined_call_operand.vmem [shape: f32[8,2], index: 7, kind: output, shape index: {}]
  %s8 = sld [smem:[#allocation0]]
  $region42: #{tpu_custom_call.1} parent=0
    _
  %s10 = ssub.s32 1, %s8
  %s11 = scalar_select 0, %s10, %s8
  $region1: #{tpu_custom_call.1} parent=0
    #allocation2 [shape = 'u8[4096]{0}', space=vmem, size = 0x1000, scoped, tag = 'input window, operand 1, single buffered']
    #allocation3 [shape = 's32[1]{0}', space=sflag, size = 0x4, scoped, tag = 'scoped memory for tpu_custom_call.1']
    %12 = vsyncpa [#allocation3], 0
    // Predicated region
    $region2: #{tpu_custom_call.1} parent=1 // pred_check
      _
    $region3: #{tpu_custom_call.1} parent=1 // pred_check_branch
      %14 = sbr.rel (0) target = $region5
    $region4: #{tpu_custom_call.1} parent=1 // pred_region
      _
    $region5: #{tpu_custom_call.1} parent=1 // pred_fallthru
      _
    // Predicated region
    $region6: #{tpu_custom_call.1} parent=1 // pred_check
      _
    $region7: #{tpu_custom_call.1} parent=1 // pred_check_branch
      %16 = sbr.rel (0) target = $region9
    $region8: #{tpu_custom_call.1} parent=1 // pred_region
      %s18 = ssub.s32 128, 128
      %19 = vsyncadd [#allocation3], %s18
      %s21 = sshll.u32 [#allocation2], 4
      %s22 = int_to_ptr.vmem [resolvable:$true] %s21
      %24 = dma.hbm_to_vmem [thread:$0]  %s1, 128, %s22, [#allocation3]
    $region9: #{tpu_custom_call.1} parent=1 // pred_fallthru
      _
    // Predicated region
    $region10: #{tpu_custom_call.1} parent=1 // pred_check
      _
    $region11: #{tpu_custom_call.1} parent=1 // pred_check_branch
      %26 = sbr.rel (0) target = $region13
    $region12: #{tpu_custom_call.1} parent=1 // pred_region
      _
    $region13: #{tpu_custom_call.1} parent=1 // pred_fallthru
      _
    // Predicated region
    $region14: #{tpu_custom_call.1} parent=1 // pred_check
      _
    $region15: #{tpu_custom_call.1} parent=1 // pred_check_branch
      %28 = sbr.rel (0) target = $region17
    $region16: #{tpu_custom_call.1} parent=1 // pred_region
      _
    $region17: #{tpu_custom_call.1} parent=1 // pred_fallthru
      _
    // Predicated region
    $region18: #{tpu_custom_call.1} parent=1 // pred_check
      _
    $region19: #{tpu_custom_call.1} parent=1 // pred_check_branch
      %30 = sbr.rel (0) target = $region21
    $region20: #{tpu_custom_call.1} parent=1 // pred_region
      _
    $region21: #{tpu_custom_call.1} parent=1 // pred_fallthru
      _
    // Predicated region
    $region22: #{tpu_custom_call.1} parent=1 // pred_check
      _
    $region23: #{tpu_custom_call.1} parent=1 // pred_check_branch
      %32 = sbr.rel (0) target = $region25
    $region24: #{tpu_custom_call.1} parent=1 // pred_region
      _
    $region25: #{tpu_custom_call.1} parent=1 // pred_fallthru
      _
    // Predicated region
    $region26: #{tpu_custom_call.1} parent=1 // pred_check
      _
    $region27: #{tpu_custom_call.1} parent=1 // pred_check_branch
      %34 = sbr.rel (0) target = $region29
    $region28: #{tpu_custom_call.1} parent=1 // pred_region
      _
    $region29: #{tpu_custom_call.1} parent=1 // pred_fallthru
      _
    // Predicated region
    $region30: #{tpu_custom_call.1} parent=1 // pred_check
      _
    $region31: #{tpu_custom_call.1} parent=1 // pred_check_branch
      %36 = sbr.rel (0) target = $region33
    $region32: #{tpu_custom_call.1} parent=1 // pred_region
      %37 = dma.done [#allocation3], 128
    $region33: #{tpu_custom_call.1} parent=1 // pred_fallthru
      _
    %v38 = vld [vmem:[%s0] sm:$0xff]
    %v39 = vld [vmem:[#allocation2] sm:$0xff]
    %v40 = vld [vmem:[%s2] sm:$0x1]
    %v42 = vlaneseq
    %v43 = vshrl.u32 %v42, 7
    %v44 = vsub.s32 0, %v43
    %v45 = vrot.slane %v40, %v44
    %vm47 = vcmask 64512
    %v49 = vsel %vm47, %v38, 0
    %51 = vmatprep.subr.mxu0 0.0
    %52 = vmatpush1.msra.mxu0 %v39
    %53 = vmatprep.subr.mxu0 0.0
    %54 = vmatpush1.msra.mxu0 0.0
    %55 = vmatprep.subr.mxu0 0.0
    %56 = vmatpush1.msra.mxu0 0.0
    %57 = vmatprep.subr.mxu0 0.0
    %58 = vmatpush1.msra.mxu0 0.0
    %59 = vmatprep.subr.mxu0 0.0
    %60 = vmatpush1.msra.mxu0 0.0
    %61 = vmatprep.subr.mxu0 0.0
    %62 = vmatpush1.msra.mxu0 0.0
    %63 = vmatprep.subr.mxu0 0.0
    %64 = vmatpush1.msra.mxu0 0.0
    %65 = vmatprep.subr.mxu0 0.0
    %66 = vmatpush1.msra.mxu0 0.0
    %67 = vmatprep.subr.mxu0 0.0
    %68 = vmatpush1.msra.mxu0 0.0
    %69 = vmatprep.subr.mxu0 0.0
    %70 = vmatpush1.msra.mxu0 0.0
    %71 = vmatprep.subr.mxu0 0.0
    %72 = vmatpush1.msra.mxu0 0.0
    %73 = vmatprep.subr.mxu0 0.0
    %74 = vmatpush1.msra.mxu0 0.0
    %75 = vmatprep.subr.mxu0 0.0
    %76 = vmatpush1.msra.mxu0 0.0
    %77 = vmatprep.subr.mxu0 0.0
    %78 = vmatpush1.msra.mxu0 0.0
    %79 = vmatprep.subr.mxu0 0.0
    %80 = vmatpush1.msra.mxu0 0.0
    %81 = vmatprep.subr.mxu0 0.0
    %82 = vmatpush1.msra.mxu0 0.0
    %83 = vmatprep.subr.mxu0 0.0
    %84 = vmatpush1.msra.mxu0 0.0
    %85 = vmatprep.subr.mxu0 0.0
    %86 = vmatpush1.msra.mxu0 0.0
    %87 = vmatprep.subr.mxu0 0.0
    %88 = vmatpush1.msra.mxu0 0.0
    %89 = vmatprep.subr.mxu0 0.0
    %90 = vmatpush1.msra.mxu0 0.0
    %91 = vmatprep.subr.mxu0 0.0
    %92 = vmatpush1.msra.mxu0 0.0
    %93 = vmatprep.subr.mxu0 0.0
    %94 = vmatpush1.msra.mxu0 0.0
    %95 = vmatprep.subr.mxu0 0.0
    %96 = vmatpush1.msra.mxu0 0.0
    %97 = vmatprep.subr.mxu0 0.0
    %98 = vmatpush1.msra.mxu0 0.0
    %99 = vmatprep.subr.mxu0 0.0
    %100 = vmatpush1.msra.mxu0 0.0
    %101 = vmatprep.subr.mxu0 0.0
    %102 = vmatpush1.msra.mxu0 0.0
    %103 = vmatprep.subr.mxu0 0.0
    %104 = vmatpush1.msra.mxu0 0.0
    %105 = vmatprep.subr.mxu0 0.0
    %106 = vmatpush1.msra.mxu0 0.0
    %107 = vmatprep.subr.mxu0 0.0
    %108 = vmatpush1.msra.mxu0 0.0
    %109 = vmatprep.subr.mxu0 0.0
    %110 = vmatpush1.msra.mxu0 0.0
    %111 = vmatprep.subr.mxu0 0.0
    %112 = vmatpush1.msra.mxu0 0.0
    %113 = vmatprep.subr.mxu0 0.0
    %114 = vmatpush1.msra.mxu0 0.0
    %115 = vmatprep.mubr.f32.mxu0 0.0
    %116 = vmatmul.mubr.f32.gmra.mrb[0].mxu0 %v49
    %v117 = vpop.f32.mrb[0].mxu0
    %v118 = vadd.f32 %v45, %v117
    %v119 = vpop.f32.mrb[0].mxu0
    %120 = vdwg.mxu0
    %v121 = vmax.f32 %v118, 0.0
    %v122 = vld [vmem:[%s3] sm:$0xff]
    %v123 = vld [vmem:[%s3 + $0x8] sm:$0xff]
    %v124 = vld [vmem:[%s3 + $0x10] sm:$0xff]
    %v125 = vld [vmem:[%s3 + $0x18] sm:$0xff]
    %v126 = vld [vmem:[%s3 + $0x20] sm:$0xff]
    %v127 = vld [vmem:[%s3 + $0x28] sm:$0xff]
    %v128 = vld [vmem:[%s3 + $0x30] sm:$0xff]
    %v129 = vld [vmem:[%s3 + $0x38] sm:$0xff]
    %v130 = vld [vmem:[%s3 + $0x40] sm:$0xff]
    %v131 = vld [vmem:[%s3 + $0x48] sm:$0xff]
    %v132 = vld [vmem:[%s3 + $0x50] sm:$0xff]
    %v133 = vld [vmem:[%s3 + $0x58] sm:$0xff]
    %v134 = vld [vmem:[%s3 + $0x60] sm:$0xff]
    %v135 = vld [vmem:[%s3 + $0x68] sm:$0xff]
    %v136 = vld [vmem:[%s3 + $0x70] sm:$0xff]
    %v137 = vld [vmem:[%s3 + $0x78] sm:$0xff]
    %v138 = vld [vmem:[%s4] sm:$0x1]
    %v140 = vlaneseq
    %v141 = vshrl.u32 %v140, 7
    %v142 = vsub.s32 0, %v141
    %v143 = vrot.slane %v138, %v142
    %145 = vmatprep.subr.mxu0 0.0
    %146 = vmatpush1.msra.mxu0 %v122
    %147 = vmatprep.subr.mxu0 0.0
    %148 = vmatpush1.msra.mxu0 %v123
    %149 = vmatprep.subr.mxu0 0.0
    %150 = vmatpush1.msra.mxu0 %v124
    %151 = vmatprep.subr.mxu0 0.0
    %152 = vmatpush1.msra.mxu0 %v125
    %153 = vmatprep.subr.mxu0 0.0
    %154 = vmatpush1.msra.mxu0 %v126
    %155 = vmatprep.subr.mxu0 0.0
    %156 = vmatpush1.msra.mxu0 %v127
    %157 = vmatprep.subr.mxu0 0.0
    %158 = vmatpush1.msra.mxu0 %v128
    %159 = vmatprep.subr.mxu0 0.0
    %160 = vmatpush1.msra.mxu0 %v129
    %161 = vmatprep.subr.mxu0 0.0
    %162 = vmatpush1.msra.mxu0 %v130
    %163 = vmatprep.subr.mxu0 0.0
    %164 = vmatpush1.msra.mxu0 %v131
    %165 = vmatprep.subr.mxu0 0.0
    %166 = vmatpush1.msra.mxu0 %v132
    %167 = vmatprep.subr.mxu0 0.0
    %168 = vmatpush1.msra.mxu0 %v133
    %169 = vmatprep.subr.mxu0 0.0
    %170 = vmatpush1.msra.mxu0 %v134
    %171 = vmatprep.subr.mxu0 0.0
    %172 = vmatpush1.msra.mxu0 %v135
    %173 = vmatprep.subr.mxu0 0.0
    %174 = vmatpush1.msra.mxu0 %v136
    %175 = vmatprep.subr.mxu0 0.0
    %176 = vmatpush1.msra.mxu0 %v137
    %177 = vmatprep.subr.mxu0 0.0
    %178 = vmatpush1.msra.mxu0 0.0
    %179 = vmatprep.subr.mxu0 0.0
    %180 = vmatpush1.msra.mxu0 0.0
    %181 = vmatprep.subr.mxu0 0.0
    %182 = vmatpush1.msra.mxu0 0.0
    %183 = vmatprep.subr.mxu0 0.0
    %184 = vmatpush1.msra.mxu0 0.0
    %185 = vmatprep.subr.mxu0 0.0
    %186 = vmatpush1.msra.mxu0 0.0
    %187 = vmatprep.subr.mxu0 0.0
    %188 = vmatpush1.msra.mxu0 0.0
    %189 = vmatprep.subr.mxu0 0.0
    %190 = vmatpush1.msra.mxu0 0.0
    %191 = vmatprep.subr.mxu0 0.0
    %192 = vmatpush1.msra.mxu0 0.0
    %193 = vmatprep.subr.mxu0 0.0
    %194 = vmatpush1.msra.mxu0 0.0
    %195 = vmatprep.subr.mxu0 0.0
    %196 = vmatpush1.msra.mxu0 0.0
    %197 = vmatprep.subr.mxu0 0.0
    %198 = vmatpush1.msra.mxu0 0.0
    %199 = vmatprep.subr.mxu0 0.0
    %200 = vmatpush1.msra.mxu0 0.0
    %201 = vmatprep.subr.mxu0 0.0
    %202 = vmatpush1.msra.mxu0 0.0
    %203 = vmatprep.subr.mxu0 0.0
    %204 = vmatpush1.msra.mxu0 0.0
    %205 = vmatprep.subr.mxu0 0.0
    %206 = vmatpush1.msra.mxu0 0.0
    %207 = vmatprep.subr.mxu0 0.0
    %208 = vmatpush1.msra.mxu0 0.0
    %209 = vmatprep.mubr.f32.mxu0 0.0
    %210 = vmatmul.mubr.f32.gmra.mrb[0].mxu0 %v121
    %v211 = vpop.f32.mrb[0].mxu0
    %v212 = vadd.f32 %v143, %v211
    %v213 = vpop.f32.mrb[0].mxu0
    %214 = vdwg.mxu0
    %v215 = vmax.f32 %v212, 0.0
    %v216 = vld [vmem:[%s5] sm:$0xff]
    %v217 = vld [vmem:[%s5 + $0x8] sm:$0xff]
    %v218 = vld [vmem:[%s5 + $0x10] sm:$0xff]
    %v219 = vld [vmem:[%s5 + $0x18] sm:$0xff]
    %v220 = vld [vmem:[%s5 + $0x20] sm:$0xff]
    %v221 = vld [vmem:[%s5 + $0x28] sm:$0xff]
    %v222 = vld [vmem:[%s5 + $0x30] sm:$0xff]
    %v223 = vld [vmem:[%s5 + $0x38] sm:$0xff]
    %v224 = vld [vmem:[%s5 + $0x40] sm:$0xff]
    %v225 = vld [vmem:[%s5 + $0x48] sm:$0xff]
    %v226 = vld [vmem:[%s5 + $0x50] sm:$0xff]
    %v227 = vld [vmem:[%s5 + $0x58] sm:$0xff]
    %v228 = vld [vmem:[%s5 + $0x60] sm:$0xff]
    %v229 = vld [vmem:[%s5 + $0x68] sm:$0xff]
    %v230 = vld [vmem:[%s5 + $0x70] sm:$0xff]
    %v231 = vld [vmem:[%s5 + $0x78] sm:$0xff]
    %v232 = vld [vmem:[%s6] sm:$0x1]
    %v234 = vlaneseq
    %v235 = vshrl.u32 %v234, 7
    %v236 = vsub.s32 0, %v235
    %v237 = vrot.slane %v232, %v236
    %239 = vmatprep.subr.mxu0 0.0
    %240 = vmatpush1.msra.mxu0 %v216
    %241 = vmatprep.subr.mxu0 0.0
    %242 = vmatpush1.msra.mxu0 %v217
    %243 = vmatprep.subr.mxu0 0.0
    %244 = vmatpush1.msra.mxu0 %v218
    %245 = vmatprep.subr.mxu0 0.0
    %246 = vmatpush1.msra.mxu0 %v219
    %247 = vmatprep.subr.mxu0 0.0
    %248 = vmatpush1.msra.mxu0 %v220
    %249 = vmatprep.subr.mxu0 0.0
    %250 = vmatpush1.msra.mxu0 %v221
    %251 = vmatprep.subr.mxu0 0.0
    %252 = vmatpush1.msra.mxu0 %v222
    %253 = vmatprep.subr.mxu0 0.0
    %254 = vmatpush1.msra.mxu0 %v223
    %255 = vmatprep.subr.mxu0 0.0
    %256 = vmatpush1.msra.mxu0 %v224
    %257 = vmatprep.subr.mxu0 0.0
    %258 = vmatpush1.msra.mxu0 %v225
    %259 = vmatprep.subr.mxu0 0.0
    %260 = vmatpush1.msra.mxu0 %v226
    %261 = vmatprep.subr.mxu0 0.0
    %262 = vmatpush1.msra.mxu0 %v227
    %263 = vmatprep.subr.mxu0 0.0
    %264 = vmatpush1.msra.mxu0 %v228
    %265 = vmatprep.subr.mxu0 0.0
    %266 = vmatpush1.msra.mxu0 %v229
    %267 = vmatprep.subr.mxu0 0.0
    %268 = vmatpush1.msra.mxu0 %v230
    %269 = vmatprep.subr.mxu0 0.0
    %270 = vmatpush1.msra.mxu0 %v231
    %271 = vmatprep.subr.mxu0 0.0
    %272 = vmatpush1.msra.mxu0 0.0
    %273 = vmatprep.subr.mxu0 0.0
    %274 = vmatpush1.msra.mxu0 0.0
    %275 = vmatprep.subr.mxu0 0.0
    %276 = vmatpush1.msra.mxu0 0.0
    %277 = vmatprep.subr.mxu0 0.0
    %278 = vmatpush1.msra.mxu0 0.0
    %279 = vmatprep.subr.mxu0 0.0
    %280 = vmatpush1.msra.mxu0 0.0
    %281 = vmatprep.subr.mxu0 0.0
    %282 = vmatpush1.msra.mxu0 0.0
    %283 = vmatprep.subr.mxu0 0.0
    %284 = vmatpush1.msra.mxu0 0.0
    %285 = vmatprep.subr.mxu0 0.0
    %286 = vmatpush1.msra.mxu0 0.0
    %287 = vmatprep.subr.mxu0 0.0
    %288 = vmatpush1.msra.mxu0 0.0
    %289 = vmatprep.subr.mxu0 0.0
    %290 = vmatpush1.msra.mxu0 0.0
    %291 = vmatprep.subr.mxu0 0.0
    %292 = vmatpush1.msra.mxu0 0.0
    %293 = vmatprep.subr.mxu0 0.0
    %294 = vmatpush1.msra.mxu0 0.0
    %295 = vmatprep.subr.mxu0 0.0
    %296 = vmatpush1.msra.mxu0 0.0
    %297 = vmatprep.subr.mxu0 0.0
    %298 = vmatpush1.msra.mxu0 0.0
    %299 = vmatprep.subr.mxu0 0.0
    %300 = vmatpush1.msra.mxu0 0.0
    %301 = vmatprep.subr.mxu0 0.0
    %302 = vmatpush1.msra.mxu0 0.0
    %303 = vmatprep.mubr.f32.mxu0 0.0
    %304 = vmatmul.mubr.f32.gmra.mrb[0].mxu0 %v215
    %v305 = vpop.f32.mrb[0].mxu0
    %v306 = vadd.f32 %v237, %v305
    %v307 = vpop.f32.mrb[0].mxu0
    %308 = vdwg.mxu0
    %vm309 = vcmask 15360
    %310 = vst.msk [vmem:[%s7] sm:$0xff] %vm309, %v306
    // Predicated region
    $region34: #{tpu_custom_call.1} parent=1 // pred_check
      _
    $region35: #{tpu_custom_call.1} parent=1 // pred_check_branch
      %312 = sbr.rel (0) target = $region37
    $region36: #{tpu_custom_call.1} parent=1 // pred_region
      _
    $region37: #{tpu_custom_call.1} parent=1 // pred_fallthru
      _
    // Predicated region
    $region38: #{tpu_custom_call.1} parent=1 // pred_check
      _
    $region39: #{tpu_custom_call.1} parent=1 // pred_check_branch
      %314 = sbr.rel (0) target = $region41
    $region40: #{tpu_custom_call.1} parent=1 // pred_region
      _
    $region41: #{tpu_custom_call.1} parent=1 // pred_fallthru
      _
    %315 = vsyncpa [#allocation3], 1

</llo_original>
